<compile_context>
chip_gen: v5e
topology: v5e:2x2
jax: 0.10.0
libtpu: 0.0.40
codegen_flags: <defaults>
</compile_context>

<pallas_src>
import jax
import jax.numpy as jnp
from jax.experimental import pallas as pl
from jax.experimental.pallas import tpu as pltpu


def _focus_pw_conv_kernel(w_ref, b_ref, y_ref, o_ref):
    # w_ref: (c2, 4*c1)  x.dtype  BN-folded 1x1 conv weight (grid-invariant)
    # b_ref: (c2, 1)     f32      BN-folded bias
    # y_ref: (4*c1, T)   x.dtype  one spatial tile of the space-to-depth input
    # o_ref: (c2, T)     x.dtype  output tile
    acc = jnp.dot(w_ref[...], y_ref[...],
                  preferred_element_type=jnp.float32)          # MXU, f32 acc
    acc = acc + b_ref[...]                                     # f32 bias
    o_ref[...] = (acc * jax.nn.sigmoid(acc)).astype(o_ref.dtype)   # SiLU


def _pick_spatial_tile(hw, c_in, c_out, itemsize, n_batch,
                       vmem_budget_bytes=12 * 1024 * 1024, max_tile=32768):
    """Largest multiple-of-128 tile dividing hw that fits the VMEM budget.

    hw must already be a multiple of 128.  Budget covers the double-buffered
    input (c_in, T) and output (c_out, T) blocks.
    """
    assert hw % 128 == 0
    t_cap = vmem_budget_bytes // (2 * (c_in + c_out) * itemsize)
    t = min(hw, max_tile, max(t_cap, 128))
    t = max(128, (t // 128) * 128)
    while hw % t != 0:
        t -= 128
    # Keep >= 2 grid steps when batch == 1 so both v7x TensorCores get work.
    if n_batch == 1 and t == hw and hw >= 256:
        t = max(128, ((hw // 2) // 128) * 128)
        while hw % t != 0:
            t -= 128
    return t


def focus_forward(x, conv_w, bn_gamma, bn_beta, bn_mean, bn_var, eps=1e-5):
    """Focus forward (k=1, s=1, g=1, act=SiLU, eval-mode BatchNorm).

    x:       (N, c1, H, W)
    conv_w:  (c2, 4*c1, 1, 1)   Conv2d weight (no bias)
    bn_*:    (c2,)              BatchNorm2d affine params + running stats
    returns: (N, c2, H//2, W//2)
    """
    N, C1, H, W = x.shape
    C2 = conv_w.shape[0]
    assert conv_w.shape[1] == 4 * C1
    assert conv_w.shape[2] == 1 and conv_w.shape[3] == 1, "only k=1 implemented"
    assert H % 2 == 0 and W % 2 == 0
    C4 = 4 * C1
    Ho, Wo = H // 2, W // 2
    HW = Ho * Wo
    HWp = ((HW + 127) // 128) * 128          # lane-dense padded spatial extent

    # --- space-to-depth as one reshape+transpose --------------------------------
    # Channel order matches torch.cat([ee, oe, eo, oo]): block = dw*2 + dh, c1.
    y = x.reshape(N, C1, Ho, 2, Wo, 2)        # free view: (n, c1, ho, dh, wo, dw)
    y = y.transpose(0, 5, 3, 1, 2, 4)         # (n, dw, dh, c1, ho, wo)
    y = y.reshape(N, C4, HW)                  # lane axis = Ho*Wo
    if HWp != HW:
        y = jnp.pad(y, ((0, 0), (0, 0), (0, HWp - HW)))

    # --- fold BatchNorm (inference stats) into the 1x1 conv (fold in f32) -------
    scale = (bn_gamma.astype(jnp.float32)
             / jnp.sqrt(bn_var.astype(jnp.float32) + eps))                 # (c2,)
    w_folded = (conv_w.reshape(C2, C4).astype(jnp.float32)
                * scale[:, None]).astype(x.dtype)                          # (c2,4c1)
    b_folded = (bn_beta.astype(jnp.float32)
                - bn_mean.astype(jnp.float32) * scale).reshape(C2, 1)      # f32

    itemsize = jnp.dtype(x.dtype).itemsize
    T = _pick_spatial_tile(HWp, C4, C2, itemsize, N)
    grid = (N, HWp // T)

    cost = pl.CostEstimate(
        flops=2 * N * C2 * C4 * HWp,
        transcendentals=N * C2 * HWp,
        bytes_accessed=itemsize * (N * C4 * HWp + N * C2 * HWp + C2 * C4) + 4 * C2,
    )

    out = pl.pallas_call(
        _focus_pw_conv_kernel,
        out_shape=jax.ShapeDtypeStruct((N, C2, HWp), x.dtype),
        grid=grid,
        in_specs=[
            pl.BlockSpec((C2, C4), lambda n, s: (0, 0)),          # folded weight
            pl.BlockSpec((C2, 1), lambda n, s: (0, 0)),           # folded bias
            pl.BlockSpec((None, C4, T), lambda n, s: (n, 0, s)),  # input tile
        ],
        out_specs=pl.BlockSpec((None, C2, T), lambda n, s: (n, 0, s)),
        compiler_params=pltpu.CompilerParams(
            dimension_semantics=("parallel", "parallel"),
            # Advisory: let XLA fuse the space-to-depth producer into the input
            # DMA of operand 2 instead of materializing it in HBM.
            allow_input_fusion=[False, False, True],
            vmem_limit_bytes=32 * 1024 * 1024,
        ),
        cost_estimate=cost,
    )(w_folded, b_folded, y)

    return out[:, :, :HW].reshape(N, C2, Ho, Wo)


if __name__ == "__main__":
    key = jax.random.PRNGKey(0)
    kx, kw, kg, kb, km, kv = jax.random.split(key, 6)

    N, C1, H, W = 2, 4, 16, 16
    C2, K = 8, 1
    eps = 1e-5

    x = jax.random.normal(kx, (N, C1, H, W), dtype=jnp.float32)

    # Deterministic parameter init (PyTorch default kaiming-uniform bound).
    fan_in = 4 * C1 * K * K
    bound = 1.0 / (fan_in ** 0.5)
    conv_w = jax.random.uniform(kw, (C2, 4 * C1, K, K),
                                minval=-bound, maxval=bound, dtype=jnp.float32)
    gamma = jax.random.uniform(kg, (C2,), minval=0.5, maxval=1.5, dtype=jnp.float32)
    beta = jax.random.normal(kb, (C2,), dtype=jnp.float32) * 0.1
    r_mean = jax.random.normal(km, (C2,), dtype=jnp.float32) * 0.1
    r_var = jax.random.uniform(kv, (C2,), minval=0.5, maxval=1.5, dtype=jnp.float32)

    out = focus_forward(x, conv_w, gamma, beta, r_mean, r_var, eps=eps)
    out = jax.block_until_ready(out)

    # Pure-JAX reference mirroring the PyTorch Focus forward (eval-mode BN).
    cat = jnp.concatenate(
        [x[..., ::2, ::2], x[..., 1::2, ::2], x[..., ::2, 1::2], x[..., 1::2, 1::2]],
        axis=1,
    )
    conv = jax.lax.conv_general_dilated(
        cat, conv_w, window_strides=(1, 1), padding=((0, 0), (0, 0)),
        dimension_numbers=("NCHW", "OIHW", "NCHW"))
    bn = ((conv - r_mean[None, :, None, None])
          / jnp.sqrt(r_var + eps)[None, :, None, None]
          * gamma[None, :, None, None] + beta[None, :, None, None])
    ref = bn * jax.nn.sigmoid(bn)   # SiLU

    assert out.shape == ref.shape == (N, C2, H // 2, W // 2)
    assert jnp.allclose(out, ref, atol=2e-4, rtol=2e-4), "mismatch vs JAX reference"
    print("KERNEL_OK")
</pallas_src>

<mosaic_0001>
module attributes {stable_mosaic.version = 11 : i64} {
  func.func @_focus_pw_conv_kernel(%arg0: i32, %arg1: i32, %arg2: memref<8x16xf32, #tpu.memory_space<vmem>>, %arg3: memref<8x1xf32, #tpu.memory_space<vmem>>, %arg4: memref<1x16x128xf32, #tpu.memory_space<vmem>>, %arg5: memref<1x8x128xf32, #tpu.memory_space<vmem>>) attributes {dimension_semantics = [#tpu.dimension_semantics<parallel>, #tpu.dimension_semantics<parallel>], iteration_bounds = array<i64: 2, 1>, scalar_prefetch = 0 : i64, scratch_operands = 0 : i64, tpu.core_type = #tpu.core_type<tc>, window_params = [{pipeline_mode = #tpu.pipeline_mode<synchronous>, transform_indices = @transform_0, window_bounds = array<i64: 8, 16>}, {pipeline_mode = #tpu.pipeline_mode<synchronous>, transform_indices = @transform_1, window_bounds = array<i64: 8, 1>}, {transform_indices = @transform_2, window_bounds = array<i64: 1, 16, 128>}, {transform_indices = @transform_3, window_bounds = array<i64: 1, 8, 128>}]} {
    %c0 = arith.constant 0 : index
    %c0_0 = arith.constant 0 : index
    %0 = vector.load %arg2[%c0, %c0_0] : memref<8x16xf32, #tpu.memory_space<vmem>>, vector<8x16xf32>
    %c0_1 = arith.constant 0 : index
    %c0_2 = arith.constant 0 : index
    %c0_3 = arith.constant 0 : index
    %1 = vector.load %arg4[%c0_1, %c0_2, %c0_3] : memref<1x16x128xf32, #tpu.memory_space<vmem>>, vector<1x16x128xf32>
    %2 = vector.shape_cast %1 : vector<1x16x128xf32> to vector<16x128xf32>
    %cst = arith.constant dense<0.000000e+00> : vector<8x128xf32>
    %3 = tpu.matmul %0, %2, %cst {dimension_numbers = #tpu.dot_dimension_numbers<[1], [0], [0], [1], [0, 0, 1, 1], [], []>} : vector<8x16xf32>, vector<16x128xf32>, vector<8x128xf32> -> vector<8x128xf32>
    %c0_4 = arith.constant 0 : index
    %c0_5 = arith.constant 0 : index
    %4 = vector.load %arg3[%c0_4, %c0_5] : memref<8x1xf32, #tpu.memory_space<vmem>>, vector<8x1xf32>
    %5 = vector.broadcast %4 : vector<8x1xf32> to vector<8x128xf32>
    %6 = arith.addf %3, %5 : vector<8x128xf32>
    %7 = arith.negf %6 : vector<8x128xf32>
    %8 = math.exp %7 : vector<8x128xf32>
    %cst_6 = arith.constant 1.000000e+00 : f32
    %9 = vector.broadcast %cst_6 : f32 to vector<8x128xf32>
    %10 = arith.addf %9, %8 : vector<8x128xf32>
    %11 = arith.divf %9, %10 : vector<8x128xf32>
    %12 = arith.mulf %6, %11 : vector<8x128xf32>
    %c0_7 = arith.constant 0 : index
    %c0_8 = arith.constant 0 : index
    %c0_9 = arith.constant 0 : index
    %13 = vector.load %arg5[%c0_7, %c0_8, %c0_9] : memref<1x8x128xf32, #tpu.memory_space<vmem>>, vector<1x8x128xf32>
    %14 = vector.shape_cast %13 : vector<1x8x128xf32> to vector<8x128xf32>
    %15 = vector.shape_cast %12 : vector<8x128xf32> to vector<1x8x128xf32>
    tpu.vector_store %arg5[%c0_7, %c0_8, %c0_9], %15 {strides = array<i32>} : memref<1x8x128xf32, #tpu.memory_space<vmem>>, vector<1x8x128xf32>,
    return
  }
  func.func @transform_0(%arg0: i32, %arg1: i32) -> (i32, i32) {
    %c0_i32 = arith.constant 0 : i32
    %c0_i32_0 = arith.constant 0 : i32
    %c0_i32_1 = arith.constant 0 : i32
    return %c0_i32, %c0_i32_0 : i32, i32
  }
  func.func @transform_1(%arg0: i32, %arg1: i32) -> (i32, i32) {
    %c0_i32 = arith.constant 0 : i32
    %c0_i32_0 = arith.constant 0 : i32
    %c0_i32_1 = arith.constant 0 : i32
    return %c0_i32, %c0_i32_0 : i32, i32
  }
  func.func @transform_2(%arg0: i32, %arg1: i32) -> (i32, i32, i32) {
    %c0_i32 = arith.constant 0 : i32
    %c0_i32_0 = arith.constant 0 : i32
    return %arg0, %c0_i32, %arg1 : i32, i32, i32
  }
  func.func @transform_3(%arg0: i32, %arg1: i32) -> (i32, i32, i32) {
    %c0_i32 = arith.constant 0 : i32
    %c0_i32_0 = arith.constant 0 : i32
    return %arg0, %c0_i32, %arg1 : i32, i32, i32
  }
}

</mosaic_0001>

<llo_original>
// kernel: tpu_custom_call.1
$region0: #{tpu_custom_call.1}
  #allocation0 [shape = 'u32[]', space=smem, size = 0x4, offset = 0x4, fixed_abs, tag = 'smem constant byte address 0x4 - core index']
  #allocation1 [shape = 'u32[72,128]{1,0:T(1,128)}', space=vmem, size = 0x9000, scoped, tag = 'internal scratch']
  %s0 = inlined_call_operand.vmem [shape: f32[8,16], index: 0, kind: input, shape index: {}]
  %s1 = inlined_call_operand.vmem [shape: f32[8,1], index: 1, kind: input, shape index: {}]
  %s2 = inlined_call_operand.hbm [shape: f32[2,16,128], index: 2, kind: input, shape index: {}]
  %s3 = inlined_call_operand.hbm [shape: f32[2,8,128], index: 3, kind: output, shape index: {}]
  %s4 = sld [smem:[#allocation0]]
  $region49: #{tpu_custom_call.1} parent=0
    _
  %s6 = ssub.s32 1, %s4
  %s7 = scalar_select 0, %s6, %s4
  $region1: #{tpu_custom_call.1} parent=0
    #allocation2 [shape = 'u8[16384]{0}', space=vmem, size = 0x4000, scoped, tag = 'input window, operand 2']
    #allocation3 [shape = 's32[2]{0}', space=sflag, size = 0x8, scoped, tag = 'scoped memory for tpu_custom_call.1']
    #allocation4 [shape = 's32[2]{0}', space=sflag, size = 0x8, scoped, tag = 'scoped memory for tpu_custom_call.1']
    #allocation5 [shape = 'u8[8192]{0}', space=vmem, size = 0x2000, scoped, tag = 'output window, operand 0']
    %8 = vsyncpa [#allocation3], 0
    %s9 = scalar_lea.sflag [#allocation3], 1
    %10 = vsyncpa %s9, 0
    %11 = vsyncpa [#allocation4], 0
    %s12 = scalar_lea.sflag [#allocation4], 1
    %13 = vsyncpa %s12, 0
    loop: start=0, step=1, limit=4
    $region2: #{tpu_custom_call.1} parent=1 // loop_pre_header
      _
    $region3: #{tpu_custom_call.1} parent=1 // loop_header
      %s15 = sphi 0, %s19
      %p16 = scmp.ge.s32.totalorder %s15, 4
      %s22 = sphi 0, %s34
      %s23 = sphi 0, %s30
      %s24 = sphi 0, %s22
      %s25 = sphi 0, %s23
      %s26 = sphi 0, %s24
      %s27 = sphi 0, %s25
      %s35 = sphi 0, %s35
      %s37 = sphi 0, %s35
      %s38 = sphi 0, %s37
      %s52 = sphi 0, %s38
      %s56 = sphi 0, %s56
      %s58 = sphi 0, %s56
      %s59 = sphi 0, %s58
      %s73 = sphi 0, %s59
      %s81 = sphi 0, %s83
      %s84 = sphi 0, %s81
      %s85 = sphi 0, %s84
      %s101 = sphi 0, %s85
      %s109 = sphi 0, %s111
      %s112 = sphi 0, %s109
      %s113 = sphi 0, %s112
      %s129 = sphi 0, %s113
    $region4: #{tpu_custom_call.1} parent=1 // loop_header_branch
      %18 = sbr.rel (%p16) target = $region8
    $region5: #{tpu_custom_call.1} parent=1 // loop_body
      %s20 = ssub.s32 %s15, 1
      %s21 = ssub.s32 %s15, 2
      %s28 = sadd.s32 1, %s23
      %p29 = scmp.ge.s32.totalorder %s28, 1
      %s30 = scalar_select %p29, 0, %s28
      %s31 = sadd.s32 1, %s22
      %s32 = scalar_select %p29, %s31, %s22
      %p33 = scmp.ge.s32.totalorder %s32, 2
      %s34 = scalar_select %p33, 0, %s32
      %s36 = sadd.s32 %s35, 1
      %p39 = scmp.eq.s32.totalorder %s15, 1
      %p40 = scmp.ne.s32.totalorder %s35, %s37
      %p41 = scmp.eq.s32.totalorder %s15, 0
      %p42 = por %p40, %p41
      %p43 = scmp.ne.s32.totalorder %s35, %s37
      %p44 = scmp.eq.s32.totalorder %s20, 1
      %p45 = por %p43, %p44
      %p46 = scmp.ne.s32.totalorder %s37, %s38
      %p47 = scmp.eq.s32.totalorder %s20, 0
      %p48 = por %p46, %p47
      %p49 = scmp.ne.s32.totalorder %s37, %s38
      %p50 = scmp.eq.s32.totalorder %s21, 1
      %p51 = por %p49, %p50
      %p53 = scmp.ne.s32.totalorder %s38, %s52
      %p54 = scmp.eq.s32.totalorder %s21, 0
      %p55 = por %p53, %p54
      %s57 = sadd.s32 %s56, 1
      %p60 = scmp.eq.s32.totalorder %s15, 1
      %p61 = scmp.ne.s32.totalorder %s56, %s58
      %p62 = scmp.eq.s32.totalorder %s15, 0
      %p63 = por %p61, %p62
      %p64 = scmp.ne.s32.totalorder %s56, %s58
      %p65 = scmp.eq.s32.totalorder %s20, 1
      %p66 = por %p64, %p65
      %p67 = scmp.ne.s32.totalorder %s58, %s59
      %p68 = scmp.eq.s32.totalorder %s20, 0
      %p69 = por %p67, %p68
      %p70 = scmp.ne.s32.totalorder %s58, %s59
      %p71 = scmp.eq.s32.totalorder %s21, 1
      %p72 = por %p70, %p71
      %p74 = scmp.ne.s32.totalorder %s59, %s73
      %p75 = scmp.eq.s32.totalorder %s21, 0
      %p76 = por %p74, %p75
      %s77 = ssub.s32 %s22, %s34
      %s78 = ssub.s32 %s23, %s30
      %s79 = sor.u32 %s77, %s78
      %p80 = scmp.eq.s32.totalorder %s79, 0
      %s82 = sadd.s32 %s81, 1
      %s83 = scalar_select %p80, %s81, %s82
      %p86 = pneg %p80
      %p87 = scmp.eq.s32.totalorder %s15, 1
      %p88 = por %p86, %p87
      %p89 = scmp.ne.s32.totalorder %s81, %s84
      %p90 = scmp.eq.s32.totalorder %s15, 0
      %p91 = por %p89, %p90
      %p92 = scmp.ne.s32.totalorder %s81, %s84
      %p93 = scmp.eq.s32.totalorder %s20, 1
      %p94 = por %p92, %p93
      %p95 = scmp.ne.s32.totalorder %s84, %s85
      %p96 = scmp.eq.s32.totalorder %s20, 0
      %p97 = por %p95, %p96
      %p98 = scmp.ne.s32.totalorder %s84, %s85
      %p99 = scmp.eq.s32.totalorder %s21, 1
      %p100 = por %p98, %p99
      %p102 = scmp.ne.s32.totalorder %s85, %s101
      %p103 = scmp.eq.s32.totalorder %s21, 0
      %p104 = por %p102, %p103
      %s105 = ssub.s32 %s22, %s34
      %s106 = ssub.s32 %s23, %s30
      %s107 = sor.u32 %s105, %s106
      %p108 = scmp.eq.s32.totalorder %s107, 0
      %s110 = sadd.s32 %s109, 1
      %s111 = scalar_select %p108, %s109, %s110
      %p114 = pneg %p108
      %p115 = scmp.eq.s32.totalorder %s15, 1
      %p116 = por %p114, %p115
      %p117 = scmp.ne.s32.totalorder %s109, %s112
      %p118 = scmp.eq.s32.totalorder %s15, 0
      %p119 = por %p117, %p118
      %p120 = scmp.ne.s32.totalorder %s109, %s112
      %p121 = scmp.eq.s32.totalorder %s20, 1
      %p122 = por %p120, %p121
      %p123 = scmp.ne.s32.totalorder %s112, %s113
      %p124 = scmp.eq.s32.totalorder %s20, 0
      %p125 = por %p123, %p124
      %p126 = scmp.ne.s32.totalorder %s112, %s113
      %p127 = scmp.eq.s32.totalorder %s21, 1
      %p128 = por %p126, %p127
      %p130 = scmp.ne.s32.totalorder %s113, %s129
      %p131 = scmp.eq.s32.totalorder %s21, 0
      %p132 = por %p130, %p131
      %p133 = scmp.le.s32.totalorder 1, %s15
      %p134 = scmp.lt.s32.totalorder %s15, 3
      %p135 = pnand %p133, %p134
      %p136 = pneg %p135
      // Predicated region
      $region9: #{tpu_custom_call.1} parent=5 // pred_check
        _
      $region10: #{tpu_custom_call.1} parent=5 // pred_check_branch
        %138 = sbr.rel (%p135) target = $region12
      $region11: #{tpu_custom_call.1} parent=5 // pred_region
        %s139 = ssub.s32 %s15, 1
        // Predicated region
        $region13: #{tpu_custom_call.1} parent=11 // pred_check
          %p140 = pneg %p48
        $region14: #{tpu_custom_call.1} parent=11 // pred_check_branch
          %142 = sbr.rel (%p140) target = $region16
        $region15: #{tpu_custom_call.1} parent=11 // pred_region
          _
        $region16: #{tpu_custom_call.1} parent=11 // pred_fallthru
          _
        // Predicated region
        $region17: #{tpu_custom_call.1} parent=11 // pred_check
          %p143 = pneg %p69
        $region18: #{tpu_custom_call.1} parent=11 // pred_check_branch
          %145 = sbr.rel (%p143) target = $region20
        $region19: #{tpu_custom_call.1} parent=11 // pred_region
          _
        $region20: #{tpu_custom_call.1} parent=11 // pred_fallthru
          _
      $region12: #{tpu_custom_call.1} parent=5 // pred_fallthru
        _
      %p146 = scmp.lt.s32.totalorder %s15, 2
      // Predicated region
      $region21: #{tpu_custom_call.1} parent=5 // pred_check
        %p147 = pneg %p146
      $region22: #{tpu_custom_call.1} parent=5 // pred_check_branch
        %149 = sbr.rel (%p147) target = $region24
      $region23: #{tpu_custom_call.1} parent=5 // pred_region
        // Predicated region
        $region25: #{tpu_custom_call.1} parent=23 // pred_check
          %p150 = pneg %p91
        $region26: #{tpu_custom_call.1} parent=23 // pred_check_branch
          %152 = sbr.rel (%p150) target = $region28
        $region27: #{tpu_custom_call.1} parent=23 // pred_region
          %s153 = sand.u32 %s81, 1
          %s154 = scalar_lea.sflag [#allocation3], %s153
          %s155 = sand.u32 %s81, 1
          %s156 = smul.addr %s155, 16
          %s157 = scalar_lea.vmem [#allocation2], %s156
          %159 = vsyncadd %s154, 0
          %s160 = smul.addr %s22, 2
          %s161 = sadd.s32 %s23, %s160
          %s162 = smul.addr %s161, 8
          %s163 = scalar_lea.hbm %s2, %s162
          %s164 = sshll.u32 %s163, 4
          %s165 = int_to_ptr.hbm [resolvable:$true] %s164
          %s166 = sshll.u32 %s157, 4
          %s167 = int_to_ptr.vmem [resolvable:$true] %s166
          %172 = dma.hbm_to_vmem [thread:$0]  %s165, 256, %s167, %s154, 128, 128, 8
        $region28: #{tpu_custom_call.1} parent=23 // pred_fallthru
          _
      $region24: #{tpu_custom_call.1} parent=5 // pred_fallthru
        _
      %p173 = scmp.le.s32.totalorder 1, %s15
      %p174 = scmp.lt.s32.totalorder %s15, 3
      %p175 = pnand %p173, %p174
      %p176 = pneg %p175
      // Predicated region
      $region29: #{tpu_custom_call.1} parent=5 // pred_check
        _
      $region30: #{tpu_custom_call.1} parent=5 // pred_check_branch
        %178 = sbr.rel (%p175) target = $region32
      $region31: #{tpu_custom_call.1} parent=5 // pred_region
        %s179 = ssub.s32 %s15, 1
        %s180 = sand.u32 %s84, 1
        %s181 = scalar_lea.sflag [#allocation3], %s180
        %s182 = sand.u32 %s84, 1
        %s183 = smul.addr %s182, 16
        %s184 = scalar_lea.vmem [#allocation2], %s183
        // Predicated region
        $region33: #{tpu_custom_call.1} parent=31 // pred_check
          %p185 = pneg %p97
        $region34: #{tpu_custom_call.1} parent=31 // pred_check_branch
          %187 = sbr.rel (%p185) target = $region36
        $region35: #{tpu_custom_call.1} parent=31 // pred_region
          %189 = dma.done %s181, 256
        $region36: #{tpu_custom_call.1} parent=31 // pred_fallthru
          _
        %p190 = pneg %p48
        %p191 = pneg %p45
        %p192 = pneg %p69
        %p193 = pneg %p66
        %s194 = sand.u32 %s84, 1
        %s195 = scalar_lea.sflag [#allocation3], %s194
        %s196 = sand.u32 %s84, 1
        %s197 = smul.addr %s196, 16
        %s198 = scalar_lea.vmem [#allocation2], %s197
        %p199 = pneg %p97
        %p200 = pneg %p94
        %p201 = pneg %p125
        %p202 = pneg %p122
        %s203 = sand.u32 %s112, 1
        %s204 = scalar_lea.sflag [#allocation4], %s203
        %s205 = sand.u32 %s112, 1
        %s206 = smul.addr %s205, 8
        %s207 = scalar_lea.vmem [#allocation5], %s206
        %v208 = vld [vmem:[%s0] sm:$0xff]
        %v209 = vld [vmem:[%s184] sm:$0xff]
        %v210 = vld [vmem:[%s184 + $0x8] sm:$0xff]
        %v211 = vld [vmem:[%s1] sm:$0xff]
        %213 = vset.pattern.permute.xlu0 0
        %214 = vperm.xlu0 %213, %v211
        %v215 = vpop.permute.xlu0 %214
        %vm217 = vcmask 130048
        %v219 = vsel %vm217, %v208, 0
        %221 = vmatpush.msra.mxu0 0.0
        %222 = vmatpush.msra.mxu0 0.0
        %223 = vmatpush.msra.mxu0 0.0
        %224 = vmatpush.msra.mxu0 0.0
        %225 = vmatpush.msra.mxu0 0.0
        %226 = vmatpush.msra.mxu0 0.0
        %227 = vmatpush.msra.mxu0 0.0
        %228 = vmatpush.msra.mxu0 0.0
        %229 = vmatpush.msra.mxu0 0.0
        %230 = vmatpush.msra.mxu0 0.0
        %231 = vmatpush.msra.mxu0 0.0
        %232 = vmatpush.msra.mxu0 0.0
        %233 = vmatpush.msra.mxu0 0.0
        %234 = vmatpush.msra.mxu0 0.0
        %235 = vmatpush.msra.mxu0 %v210
        %236 = vmatpush.msra.mxu0 %v209
        %237 = vmatmul.f32.gmra.mxu0 %v219
        %v238 = vpop.f32.mrf.mxu0
        %v239 = vadd.f32 %v215, %v238
        %240 = vdwg.mxu0
        %v241 = vxor.u32 %v239, 2147483648
        %v242 = vmul.f32 %v241, 1.442695
        %v243 = vpow.pop %v242
        %v244 = vadd.f32 %v243, 1.0
        %v245 = vrcp.pop %v244
        %v246 = vmul.f32 %v244, %v245
        %v247 = vsub.f32 1.0, %v246
        %v248 = vmul.f32 %v245, %v247
        %v249 = vadd.f32 %v245, %v248
        %vm250 = vweird.f32 %v244
        %vm251 = vweird.f32 %v245
        %vm252 = vmor %vm250, %vm251
        %v253 = vsel %vm252, %v245, %v249
        %v254 = vand.u32 2147483647, %v244
        %vm255 = vcmp.eq.f32.partialorder %v254, 8.507059e+37
        %v256 = vand.u32 %v244, 2147483648
        %v257 = vor.u32 1.1754944e-38, %v256
        %v258 = vsel %vm255, %v257, %v253
        %v259 = vmul.f32 1.0, %v258
        %v260 = vmul.f32 %v239, %v259
        %261 = vst [vmem:[%s207] sm:$0xff] %v260
        %s262 = sand.u32 %s112, 1
        %s263 = scalar_lea.sflag [#allocation4], %s262
        %s264 = sand.u32 %s112, 1
        %s265 = smul.addr %s264, 8
        %s266 = scalar_lea.vmem [#allocation5], %s265
        // Predicated region
        $region37: #{tpu_custom_call.1} parent=31 // pred_check
          %p267 = pneg %p122
        $region38: #{tpu_custom_call.1} parent=31 // pred_check_branch
          %269 = sbr.rel (%p267) target = $region40
        $region39: #{tpu_custom_call.1} parent=31 // pred_region
          %271 = vsyncadd %s263, 0
          %s272 = sadd.s32 %s25, %s24
          %s273 = smul.addr %s272, 8
          %s274 = scalar_lea.hbm %s3, %s273
          %s276 = sshll.u32 %s266, 4
          %s277 = int_to_ptr.vmem [resolvable:$true] %s276
          %s278 = sshll.u32 %s274, 4
          %s279 = int_to_ptr.hbm [resolvable:$true] %s278
          %281 = dma.vmem_to_hbm [thread:$0]  %s277, 128, %s279, %s263
        $region40: #{tpu_custom_call.1} parent=31 // pred_fallthru
          _
      $region32: #{tpu_custom_call.1} parent=5 // pred_fallthru
        _
      %p282 = scmp.le.s32.totalorder 2, %s15
      // Predicated region
      $region41: #{tpu_custom_call.1} parent=5 // pred_check
        %p283 = pneg %p282
      $region42: #{tpu_custom_call.1} parent=5 // pred_check_branch
        %285 = sbr.rel (%p283) target = $region44
      $region43: #{tpu_custom_call.1} parent=5 // pred_region
        %s286 = ssub.s32 %s15, 2
        // Predicated region
        $region45: #{tpu_custom_call.1} parent=43 // pred_check
          %p287 = pneg %p128
        $region46: #{tpu_custom_call.1} parent=43 // pred_check_branch
          %289 = sbr.rel (%p287) target = $region48
        $region47: #{tpu_custom_call.1} parent=43 // pred_region
          %s290 = sand.u32 %s113, 1
          %s291 = scalar_lea.sflag [#allocation4], %s290
          %s292 = sand.u32 %s113, 1
          %s293 = smul.addr %s292, 8
          %s294 = scalar_lea.vmem [#allocation5], %s293
          %296 = dma.done %s291, 128
        $region48: #{tpu_custom_call.1} parent=43 // pred_fallthru
          _
      $region44: #{tpu_custom_call.1} parent=5 // pred_fallthru
        _
    $region6: #{tpu_custom_call.1} parent=1 // loop_footer
      %s19 = sadd.s32 1, %s15
    $region7: #{tpu_custom_call.1} parent=1 // loop_footer_branch
      %14 = sbr.rel target = $region3
    $region8: #{tpu_custom_call.1} parent=1 // loop_exit
      _
    %297 = vsyncpa [#allocation3], 1
    %s298 = scalar_lea.sflag [#allocation3], 1
    %299 = vsyncpa %s298, 1
    %300 = vsyncpa [#allocation4], 1
    %s301 = scalar_lea.sflag [#allocation4], 1
    %302 = vsyncpa %s301, 1

</llo_original>
